<compile_context>
chip_gen: v7x
topology: tpu7x:2x2x1
jax: 0.10.0
libtpu: 0.0.40
codegen_flags: <defaults>
</compile_context>

<pallas_src>
import functools

import jax
import jax.numpy as jnp
from jax import lax
from jax.experimental import pallas as pl
from jax.experimental.pallas import tpu as pltpu


# ------------------------------ Pallas kernel ------------------------------

def _bucketing_embedding_kernel(x_ref, emb_ref, out_ref, *,
                                min_val, max_val, count, use_log_scale):
    x = x_ref[...]                                        # (bs, 1) f32
    if use_log_scale:
        x = jnp.log2(x)                                   # EUP
    # same op order as the PyTorch module: count * (x - min) / (max - min)
    b = (count * (x - min_val)) / (max_val - min_val)
    b = jnp.clip(b, 0.0, float(count - 1))
    idx = b.astype(jnp.int32)                             # trunc == floor (>= 0)

    bs = x.shape[0]
    iota = lax.broadcasted_iota(jnp.int32, (bs, count), 1)
    onehot = (iota == idx).astype(jnp.float32)            # (bs, count)
    # gather-as-matmul on the MXU: exact row selection in f32
    out_ref[...] = jnp.dot(onehot, emb_ref[...],
                           preferred_element_type=jnp.float32)


def bucketing_embedding_forward(x, emb_table, *, min_val, max_val, count,
                                use_log_scale=False):
    """JAX/Pallas equivalent of BucketingEmbedding.forward.

    x         : (bs,) float values
    emb_table : (count, dim) float32 embedding matrix
    returns   : (bs, dim) float32
    """
    if use_log_scale:
        # matches torch.log2(torch.Tensor([v])).item() done once at __init__
        min_val = float(jnp.log2(jnp.float32(min_val)))
        max_val = float(jnp.log2(jnp.float32(max_val)))
    bs = x.shape[0]
    dim = emb_table.shape[1]
    kern = functools.partial(
        _bucketing_embedding_kernel,
        min_val=float(min_val), max_val=float(max_val),
        count=int(count), use_log_scale=bool(use_log_scale))
    return pl.pallas_call(
        kern,
        out_shape=jax.ShapeDtypeStruct((bs, dim), jnp.float32),
        in_specs=[pl.BlockSpec(memory_space=pltpu.MemorySpace.VMEM),
                  pl.BlockSpec(memory_space=pltpu.MemorySpace.VMEM)],
        out_specs=pl.BlockSpec(memory_space=pltpu.MemorySpace.VMEM),
    )(x.reshape(bs, 1).astype(jnp.float32), emb_table.astype(jnp.float32))


# ----------------------------- pure-JAX reference --------------------------

def bucketing_embedding_ref(x, emb_table, *, min_val, max_val, count,
                            use_log_scale=False):
    if use_log_scale:
        min_val = float(jnp.log2(jnp.float32(min_val)))
        max_val = float(jnp.log2(jnp.float32(max_val)))
        x = jnp.log2(x)
    b = (count * (x - min_val)) / (max_val - min_val)
    idx = jnp.clip(b, 0.0, float(count - 1)).astype(jnp.int32)
    return emb_table[idx]


# ----------------------------------- main -----------------------------------

if __name__ == "__main__":
    key = jax.random.PRNGKey(0)
    bs, count, dim = 8, 32, 32
    k_emb, k_x1, k_x2 = jax.random.split(key, 3)

    # nn.Embedding default init ~ N(0, 1)
    emb = jax.random.normal(k_emb, (count, dim), jnp.float32)

    # ---- config 1: linear scale, inputs deliberately over/under-shoot range
    min_v, max_v = 0.0, 10.0
    x_lin = jax.random.uniform(k_x1, (bs,), jnp.float32, -2.0, 12.0)
    out_lin = bucketing_embedding_forward(
        x_lin, emb, min_val=min_v, max_val=max_v, count=count,
        use_log_scale=False)
    out_lin = jax.block_until_ready(out_lin)
    ref_lin = bucketing_embedding_ref(
        x_lin, emb, min_val=min_v, max_val=max_v, count=count,
        use_log_scale=False)
    assert out_lin.shape == (bs, dim)
    assert jnp.allclose(out_lin, ref_lin, atol=1e-6), "linear-scale mismatch"

    # ---- config 2: log scale (positive inputs)
    min_v2, max_v2 = 0.5, 256.0
    x_log = jax.random.uniform(k_x2, (bs,), jnp.float32, 0.25, 512.0)
    out_log = bucketing_embedding_forward(
        x_log, emb, min_val=min_v2, max_val=max_v2, count=count,
        use_log_scale=True)
    out_log = jax.block_until_ready(out_log)
    ref_log = bucketing_embedding_ref(
        x_log, emb, min_val=min_v2, max_val=max_v2, count=count,
        use_log_scale=True)
    assert out_log.shape == (bs, dim)
    assert jnp.allclose(out_log, ref_log, atol=1e-6), "log-scale mismatch"

    print("KERNEL_OK")
</pallas_src>

<mosaic_0001>
module attributes {stable_mosaic.version = 11 : i64} {
  func.func @_bucketing_embedding_kernel(%arg0: memref<8x1xf32, #tpu.memory_space<vmem>>, %arg1: memref<32x32xf32, #tpu.memory_space<vmem>>, %arg2: memref<8x32xf32, #tpu.memory_space<vmem>>) attributes {dimension_semantics = [], scalar_prefetch = 0 : i64, scratch_operands = 0 : i64, tpu.core_type = #tpu.core_type<tc>} {
    %c0 = arith.constant 0 : index
    %c0_0 = arith.constant 0 : index
    %0 = vector.load %arg0[%c0, %c0_0] : memref<8x1xf32, #tpu.memory_space<vmem>>, vector<8x1xf32>
    %cst = arith.constant 0.000000e+00 : f32
    %1 = vector.broadcast %cst : f32 to vector<8x1xf32>
    %2 = arith.subf %0, %1 : vector<8x1xf32>
    %cst_1 = arith.constant 3.200000e+01 : f32
    %3 = vector.broadcast %cst_1 : f32 to vector<8x1xf32>
    %4 = arith.mulf %3, %2 : vector<8x1xf32>
    %cst_2 = arith.constant 1.000000e+01 : f32
    %5 = vector.broadcast %cst_2 : f32 to vector<8x1xf32>
    %6 = arith.divf %4, %5 : vector<8x1xf32>
    %cst_3 = arith.constant 0.000000e+00 : f32
    %cst_4 = arith.constant 3.100000e+01 : f32
    %7 = vector.broadcast %cst_3 : f32 to vector<8x1xf32>
    %8 = arith.maximumf %7, %6 : vector<8x1xf32>
    %9 = vector.broadcast %cst_4 : f32 to vector<8x1xf32>
    %10 = arith.minimumf %9, %8 : vector<8x1xf32>
    %11 = arith.fptosi %10 : vector<8x1xf32> to vector<8x1xi32>
    %12 = tpu.iota {dimensions = array<i32: 1>} : vector<8x32xi32>
    %13 = vector.broadcast %11 : vector<8x1xi32> to vector<8x32xi32>
    %14 = arith.cmpi eq, %12, %13 : vector<8x32xi32>
    %15 = arith.extui %14 : vector<8x32xi1> to vector<8x32xi32>
    %16 = arith.sitofp %15 : vector<8x32xi32> to vector<8x32xf32>
    %c0_5 = arith.constant 0 : index
    %c0_6 = arith.constant 0 : index
    %17 = vector.load %arg1[%c0_5, %c0_6] : memref<32x32xf32, #tpu.memory_space<vmem>>, vector<32x32xf32>
    %cst_7 = arith.constant dense<0.000000e+00> : vector<8x32xf32>
    %18 = tpu.matmul %16, %17, %cst_7 {dimension_numbers = #tpu.dot_dimension_numbers<[1], [0], [0], [1], [0, 0, 1, 1], [], []>} : vector<8x32xf32>, vector<32x32xf32>, vector<8x32xf32> -> vector<8x32xf32>
    %c0_8 = arith.constant 0 : index
    %c0_9 = arith.constant 0 : index
    %19 = vector.load %arg2[%c0_8, %c0_9] : memref<8x32xf32, #tpu.memory_space<vmem>>, vector<8x32xf32>
    tpu.vector_store %arg2[%c0_8, %c0_9], %18 {strides = array<i32>} : memref<8x32xf32, #tpu.memory_space<vmem>>, vector<8x32xf32>,
    return
  }
}

</mosaic_0001>

<llo_original>
// kernel: tpu_custom_call.1
$region0: #{tpu_custom_call.1}
  #allocation0 [shape = 'u32[]', space=smem, size = 0x4, offset = 0x4, fixed_abs, tag = 'smem constant byte address 0x4 - core index']
  #allocation1 [shape = 'u32[144,128]{1,0:T(1,128)}', space=vmem, size = 0x12000, scoped, tag = 'internal scratch']
  %s0 = inlined_call_operand.vmem [shape: f32[8,1], index: 0, kind: input, shape index: {}]
  %s1 = inlined_call_operand.hbm [shape: f32[32,32], index: 1, kind: input, shape index: {}]
  %s2 = inlined_call_operand.hbm [shape: f32[8,32], index: 2, kind: output, shape index: {}]
  %s3 = sld [smem:[#allocation0]]
  $region22: #{tpu_custom_call.1} parent=0
    _
  %s5 = ssub.s32 1, %s3
  %s6 = scalar_select 0, %s5, %s3
  $region1: #{tpu_custom_call.1} parent=0
    #allocation2 [shape = 'u8[16384]{0}', space=vmem, size = 0x4000, scoped, tag = 'input window, operand 1, single buffered']
    #allocation3 [shape = 's32[1]{0}', space=sflag, size = 0x4, scoped, tag = 'scoped memory for tpu_custom_call.1']
    #allocation4 [shape = 's32[1]{0}', space=sflag, size = 0x4, scoped, tag = 'scoped memory for tpu_custom_call.1']
    #allocation5 [shape = 'u8[4096]{0}', space=vmem, size = 0x1000, scoped, tag = 'output window, operand 0, single buffered']
    %7 = vsyncpa [#allocation3], 0
    %8 = vsyncpa [#allocation4], 0
    // Predicated region
    $region2: #{tpu_custom_call.1} parent=1 // pred_check
      _
    $region3: #{tpu_custom_call.1} parent=1 // pred_check_branch
      %10 = sbr.rel (0) target = $region5
    $region4: #{tpu_custom_call.1} parent=1 // pred_region
      _
    $region5: #{tpu_custom_call.1} parent=1 // pred_fallthru
      _
    // Predicated region
    $region6: #{tpu_custom_call.1} parent=1 // pred_check
      _
    $region7: #{tpu_custom_call.1} parent=1 // pred_check_branch
      %12 = sbr.rel (0) target = $region9
    $region8: #{tpu_custom_call.1} parent=1 // pred_region
      %s14 = ssub.s32 512, 512
      %15 = vsyncadd [#allocation3], %s14
      %s16 = sshll.u32 [#allocation2], 4
      %s17 = int_to_ptr.vmem [resolvable:$true] %s16
      %22 = dma.hbm_to_vmem [thread:$0]  %s1, 512, %s17, [#allocation3], 128, 128, 8
    $region9: #{tpu_custom_call.1} parent=1 // pred_fallthru
      _
    // Predicated region
    $region10: #{tpu_custom_call.1} parent=1 // pred_check
      _
    $region11: #{tpu_custom_call.1} parent=1 // pred_check_branch
      %24 = sbr.rel (0) target = $region13
    $region12: #{tpu_custom_call.1} parent=1 // pred_region
      %25 = dma.done [#allocation3], 512
    $region13: #{tpu_custom_call.1} parent=1 // pred_fallthru
      _
    %v26 = vld [vmem:[%s0] sm:$0xff]
    %v27 = vmul.f32 %v26, 32.0
    %v28 = vrcp.pop 10.0
    %v29 = vmul.f32 %v27, %v28
    %v30 = vmax.f32 %v29, 0.0
    %v31 = vmin.f32 %v30, 31.0
    %v32 = vcvt.f32.s32.to.zero.pseudo %v31
    %v33 = vlaneseq
    %v34 = vand.u32 %v33, 127
    %35 = vset.pattern.permute.xlu0 0
    %36 = vperm.xlu0 %35, %v32
    %v37 = vpop.permute.xlu0 %36
    %vm38 = vcmp.eq.s32.totalorder %v34, %v37
    %v39 = vsel %vm38, 1, 0
    %v40 = vcvt.s32.f32 %v39
    %v41 = vld [vmem:[#allocation2] sm:$0xff]
    %v42 = vld [vmem:[#allocation2 + $0x8] sm:$0xff]
    %v43 = vld [vmem:[#allocation2 + $0x10] sm:$0xff]
    %v44 = vld [vmem:[#allocation2 + $0x18] sm:$0xff]
    %vm45 = vcmask 261120
    %v47 = vsel %vm45, %v40, 0
    %49 = vmatprep.subr.mxu0 0.0
    %50 = vmatpush1.msra.mxu0 %v41
    %51 = vmatprep.subr.mxu0 0.0
    %52 = vmatpush1.msra.mxu0 %v42
    %53 = vmatprep.subr.mxu0 0.0
    %54 = vmatpush1.msra.mxu0 %v43
    %55 = vmatprep.subr.mxu0 0.0
    %56 = vmatpush1.msra.mxu0 %v44
    %57 = vmatprep.subr.mxu0 0.0
    %58 = vmatpush1.msra.mxu0 0.0
    %59 = vmatprep.subr.mxu0 0.0
    %60 = vmatpush1.msra.mxu0 0.0
    %61 = vmatprep.subr.mxu0 0.0
    %62 = vmatpush1.msra.mxu0 0.0
    %63 = vmatprep.subr.mxu0 0.0
    %64 = vmatpush1.msra.mxu0 0.0
    %65 = vmatprep.subr.mxu0 0.0
    %66 = vmatpush1.msra.mxu0 0.0
    %67 = vmatprep.subr.mxu0 0.0
    %68 = vmatpush1.msra.mxu0 0.0
    %69 = vmatprep.subr.mxu0 0.0
    %70 = vmatpush1.msra.mxu0 0.0
    %71 = vmatprep.subr.mxu0 0.0
    %72 = vmatpush1.msra.mxu0 0.0
    %73 = vmatprep.subr.mxu0 0.0
    %74 = vmatpush1.msra.mxu0 0.0
    %75 = vmatprep.subr.mxu0 0.0
    %76 = vmatpush1.msra.mxu0 0.0
    %77 = vmatprep.subr.mxu0 0.0
    %78 = vmatpush1.msra.mxu0 0.0
    %79 = vmatprep.subr.mxu0 0.0
    %80 = vmatpush1.msra.mxu0 0.0
    %81 = vmatprep.subr.mxu0 0.0
    %82 = vmatpush1.msra.mxu0 0.0
    %83 = vmatprep.subr.mxu0 0.0
    %84 = vmatpush1.msra.mxu0 0.0
    %85 = vmatprep.subr.mxu0 0.0
    %86 = vmatpush1.msra.mxu0 0.0
    %87 = vmatprep.subr.mxu0 0.0
    %88 = vmatpush1.msra.mxu0 0.0
    %89 = vmatprep.subr.mxu0 0.0
    %90 = vmatpush1.msra.mxu0 0.0
    %91 = vmatprep.subr.mxu0 0.0
    %92 = vmatpush1.msra.mxu0 0.0
    %93 = vmatprep.subr.mxu0 0.0
    %94 = vmatpush1.msra.mxu0 0.0
    %95 = vmatprep.subr.mxu0 0.0
    %96 = vmatpush1.msra.mxu0 0.0
    %97 = vmatprep.subr.mxu0 0.0
    %98 = vmatpush1.msra.mxu0 0.0
    %99 = vmatprep.subr.mxu0 0.0
    %100 = vmatpush1.msra.mxu0 0.0
    %101 = vmatprep.subr.mxu0 0.0
    %102 = vmatpush1.msra.mxu0 0.0
    %103 = vmatprep.subr.mxu0 0.0
    %104 = vmatpush1.msra.mxu0 0.0
    %105 = vmatprep.subr.mxu0 0.0
    %106 = vmatpush1.msra.mxu0 0.0
    %107 = vmatprep.subr.mxu0 0.0
    %108 = vmatpush1.msra.mxu0 0.0
    %109 = vmatprep.subr.mxu0 0.0
    %110 = vmatpush1.msra.mxu0 0.0
    %111 = vmatprep.subr.mxu0 0.0
    %112 = vmatpush1.msra.mxu0 0.0
    %113 = vmatprep.mubr.f32.mxu0 0.0
    %114 = vmatmul.mubr.f32.gmra.mrb[0].mxu0 %v47
    %v115 = vpop.f32.mrb[0].mxu0
    %v116 = vadd.f32 0.0, %v115
    %v117 = vpop.f32.mrb[0].mxu0
    %118 = vdwg.mxu0
    %119 = vst.msk [vmem:[#allocation5] sm:$0xff] %vm45, %v116
    // Predicated region
    $region14: #{tpu_custom_call.1} parent=1 // pred_check
      _
    $region15: #{tpu_custom_call.1} parent=1 // pred_check_branch
      %121 = sbr.rel (0) target = $region17
    $region16: #{tpu_custom_call.1} parent=1 // pred_region
      %s123 = ssub.s32 128, 128
      %124 = vsyncadd [#allocation4], %s123
      %s126 = sshll.u32 [#allocation5], 4
      %s127 = int_to_ptr.vmem [resolvable:$true] %s126
      %129 = dma.vmem_to_hbm [thread:$0]  %s127, 128, %s2, [#allocation4]
    $region17: #{tpu_custom_call.1} parent=1 // pred_fallthru
      _
    // Predicated region
    $region18: #{tpu_custom_call.1} parent=1 // pred_check
      _
    $region19: #{tpu_custom_call.1} parent=1 // pred_check_branch
      %131 = sbr.rel (0) target = $region21
    $region20: #{tpu_custom_call.1} parent=1 // pred_region
      %132 = dma.done [#allocation4], 128
    $region21: #{tpu_custom_call.1} parent=1 // pred_fallthru
      _
    %133 = vsyncpa [#allocation3], 1
    %134 = vsyncpa [#allocation4], 1

</llo_original>
